<compile_context>
chip_gen: v6e
topology: v6e:2x2x1
jax: 0.10.0
libtpu: 0.0.40
codegen_flags: <defaults>
</compile_context>

<pallas_src>
import jax
import jax.numpy as jnp
from jax.experimental import pallas as pl
from jax.experimental.pallas import tpu as pltpu

LANES = 128
DEFAULT_MAX_TILE_ROWS = 8192  # 8192*128*4 B = 4 MiB per f32 input tile


def _round_up(x, m):
    return -(-x // m) * m


def _sublane_pack(dtype):
    # Native sublane packing: 4-byte -> 8, 2-byte -> 16, 1-byte -> 32.
    return {4: 8, 2: 16, 1: 32}.get(jnp.dtype(dtype).itemsize, 8)


def _num_tensorcores():
    """Best-effort TensorCore count (2 on v7x, 1 on v5e/v6e)."""
    try:
        info = pltpu.get_tpu_info()
        for attr in ("num_cores", "core_count", "num_tensorcores", "tensorcore_count"):
            v = getattr(info, attr, None)
            if isinstance(v, int) and v > 0:
                return v
    except Exception:
        pass
    try:
        v = getattr(jax.devices()[0], "num_cores", None)
        if isinstance(v, int) and v > 0:
            return v
    except Exception:
        pass
    return 1


def _make_rce_kernel(rows, tile_rows, tiles_per_split, needs_mask):
    def kernel(p_ref, t_ref, out_ref, acc_ref):
        i = pl.program_id(1)  # streaming (reduction) axis

        @pl.when(i == 0)
        def _():
            acc_ref[...] = jnp.zeros_like(acc_ref)

        x = p_ref[...].astype(jnp.float32)
        # sigmoid(x) = 0.5*(tanh(x/2)+1): one EUP op instead of exp+reciprocal.
        # sigmoid <= 1 already, so only the 1e-7 lower clamp is needed.
        p = jnp.maximum(0.5 * (jnp.tanh(0.5 * x) + 1.0), 1e-7)
        t = jnp.clip(t_ref[...].astype(jnp.float32), 1e-4, 1.0)
        contrib = p * jnp.log(t)  # (tile_rows, 128) f32

        if needs_mask:
            s = pl.program_id(0)
            row0 = (s * tiles_per_split + i) * tile_rows
            ridx = row0 + jax.lax.broadcasted_iota(jnp.int32, (tile_rows, LANES), 0)
            contrib = jnp.where(ridx < rows, contrib, 0.0)

        # vreg-shaped accumulator: pure VPU adds per step, no per-step XLU reduce.
        acc_ref[...] += contrib.reshape(tile_rows // 8, 8, LANES).sum(axis=0)

        @pl.when(i == pl.num_programs(1) - 1)
        def _():
            out_ref[...] = acc_ref[...]

    return kernel


def reversed_bce_loss(preds, targets, *, max_tile_rows=DEFAULT_MAX_TILE_ROWS,
                      num_splits=None):
    """preds, targets: (N, C) float arrays.  Returns scalar f32 loss."""
    assert preds.shape == targets.shape and preds.ndim == 2
    n, c = preds.shape
    total = n * c

    p_flat = preds.reshape(-1)
    t_flat = targets.reshape(-1)

    sub = max(_sublane_pack(preds.dtype), _sublane_pack(targets.dtype))
    align = sub * LANES
    aligned_total = (total // align) * align
    tail = total - aligned_total

    acc = jnp.zeros((), jnp.float32)

    if aligned_total > 0:
        rows = aligned_total // LANES  # multiple of `sub`

        # 2-way TensorCore split only on multi-TC chips and with enough work.
        if num_splits is None:
            num_splits = 2 if (_num_tensorcores() >= 2 and rows >= 2 * 1024) else 1

        # Adaptive tile size so the grid over-covers `rows` by at most a few
        # sublane groups (masked in-kernel, never materialized in HBM).
        num_tiles = pl.cdiv(rows, num_splits * max_tile_rows)
        tile_rows = _round_up(pl.cdiv(rows, num_splits * num_tiles), sub)
        tiles_per_split = pl.cdiv(rows, num_splits * tile_rows)
        needs_mask = (num_splits * tiles_per_split * tile_rows) != rows

        # Lane-dense view of the aligned prefix; no jnp.pad copy.
        if tail == 0:
            p_head, t_head = p_flat, t_flat
        else:
            p_head = jax.lax.slice(p_flat, (0,), (aligned_total,))
            t_head = jax.lax.slice(t_flat, (0,), (aligned_total,))
        p2 = p_head.reshape(rows, LANES)
        t2 = t_head.reshape(rows, LANES)

        in_bytes = p2.size * p2.dtype.itemsize + t2.size * t2.dtype.itemsize
        out_rows = num_splits * 8

        kernel = _make_rce_kernel(rows, tile_rows, tiles_per_split, needs_mask)
        out = pl.pallas_call(
            kernel,
            out_shape=jax.ShapeDtypeStruct((out_rows, LANES), jnp.float32),
            grid_spec=pltpu.PrefetchScalarGridSpec(
                num_scalar_prefetch=0,
                grid=(num_splits, tiles_per_split),
                in_specs=[
                    pl.BlockSpec((tile_rows, LANES),
                                 lambda s, i: (s * tiles_per_split + i, 0)),
                    pl.BlockSpec((tile_rows, LANES),
                                 lambda s, i: (s * tiles_per_split + i, 0)),
                ],
                out_specs=pl.BlockSpec((8, LANES), lambda s, i: (s, 0)),
                scratch_shapes=[pltpu.VMEM((8, LANES), jnp.float32)],
            ),
            # TODO(synk): on v7x switch the leading axis to pltpu.CORE_PARALLEL
            # if plain "parallel" does not actually shard the split across cores.
            compiler_params=pltpu.CompilerParams(
                dimension_semantics=("parallel", "arbitrary"),
                vmem_limit_bytes=32 * 1024 * 1024,
            ),
            cost_estimate=pl.CostEstimate(
                flops=6 * aligned_total,
                transcendentals=2 * aligned_total,  # tanh + log per element
                bytes_accessed=in_bytes + out_rows * LANES * 4,
            ),
        )(p2, t2)
        acc = jnp.sum(out)

    if tail:
        # < sub*128-element remainder: trivial plain-JAX epilogue instead of a
        # full-array pad/copy just for alignment.
        pt = jax.lax.slice(p_flat, (aligned_total,), (total,)).astype(jnp.float32)
        tt = jax.lax.slice(t_flat, (aligned_total,), (total,)).astype(jnp.float32)
        p = jnp.clip(jax.nn.sigmoid(pt), 1e-7, 1.0)
        t = jnp.clip(tt, 1e-4, 1.0)
        acc = acc + jnp.sum(p * jnp.log(t))

    return -(acc / n)


def _reference(preds, targets):
    p = jnp.clip(jax.nn.sigmoid(preds.astype(jnp.float32)), 1e-7, 1.0)
    t = jnp.clip(targets.astype(jnp.float32), 1e-4, 1.0)
    return -jnp.mean(jnp.sum(p * jnp.log(t), axis=1))


if __name__ == "__main__":
    key = jax.random.PRNGKey(0)
    k1, k2 = jax.random.split(key)

    # CXR-style multi-label problem: 14 classes.  total=4200 ->
    # 4096-element aligned prefix handled by the kernel + 104-element JAX tail.
    N, C = 300, 14
    preds = jax.random.normal(k1, (N, C), dtype=jnp.float32)
    targets = (jax.random.uniform(k2, (N, C)) > 0.5).astype(jnp.float32)

    loss = jax.block_until_ready(reversed_bce_loss(preds, targets))
    ref = jax.block_until_ready(_reference(preds, targets))
    assert jnp.allclose(loss, ref, rtol=1e-4, atol=1e-5), (loss, ref)

    # Exercise multi-tile streaming, partial/fully-OOB block masking and the
    # 2-way split path with a tiny tile override (data stays small).
    N2, C2 = 257, 14
    p_b = jax.random.normal(k2, (N2, C2), dtype=jnp.float32)
    t_b = (jax.random.uniform(k1, (N2, C2)) > 0.5).astype(jnp.float32)
    loss_b = jax.block_until_ready(
        reversed_bce_loss(p_b, t_b, max_tile_rows=8, num_splits=2))
    ref_b = jax.block_until_ready(_reference(p_b, t_b))
    assert jnp.allclose(loss_b, ref_b, rtol=1e-4, atol=1e-5), (loss_b, ref_b)

    print("KERNEL_OK")
</pallas_src>

<mosaic_0001>
module attributes {stable_mosaic.version = 11 : i64} {
  func.func @kernel(%arg0: i32, %arg1: i32, %arg2: memref<32x128xf32, #tpu.memory_space<vmem>>, %arg3: memref<32x128xf32, #tpu.memory_space<vmem>>, %arg4: memref<8x128xf32, #tpu.memory_space<vmem>>, %arg5: memref<8x128xf32, #tpu.memory_space<vmem>>) attributes {dimension_semantics = [#tpu.dimension_semantics<parallel>, #tpu.dimension_semantics<arbitrary>], iteration_bounds = array<i64: 1, 1>, scalar_prefetch = 0 : i64, scratch_operands = 1 : i64, tpu.core_type = #tpu.core_type<tc>, window_params = [{transform_indices = @transform_0, window_bounds = array<i64: 32, 128>}, {transform_indices = @transform_1, window_bounds = array<i64: 32, 128>}, {transform_indices = @transform_2, window_bounds = array<i64: 8, 128>}]} {
    %c0_i32 = arith.constant 0 : i32
    %0 = arith.cmpi eq, %arg1, %c0_i32 : i32
    %1 = arith.extui %0 : i1 to i32
    %c0_i32_0 = arith.constant 0 : i32
    %2 = arith.cmpi ne, %1, %c0_i32_0 : i32
    scf.if %2 {
      %cst_16 = arith.constant 0.000000e+00 : f32
      %28 = vector.broadcast %cst_16 : f32 to vector<8x128xf32>
      %c0_17 = arith.constant 0 : index
      %c0_18 = arith.constant 0 : index
      %29 = vector.load %arg5[%c0_17, %c0_18] : memref<8x128xf32, #tpu.memory_space<vmem>>, vector<8x128xf32>
      tpu.vector_store %arg5[%c0_17, %c0_18], %28 {strides = array<i32>} : memref<8x128xf32, #tpu.memory_space<vmem>>, vector<8x128xf32>,
    } else {
    }
    %c0 = arith.constant 0 : index
    %c0_1 = arith.constant 0 : index
    %3 = vector.load %arg2[%c0, %c0_1] : memref<32x128xf32, #tpu.memory_space<vmem>>, vector<32x128xf32>
    %cst = arith.constant 5.000000e-01 : f32
    %4 = vector.broadcast %cst : f32 to vector<32x128xf32>
    %5 = arith.mulf %4, %3 : vector<32x128xf32>
    %6 = math.tanh %5 : vector<32x128xf32>
    %cst_2 = arith.constant 1.000000e+00 : f32
    %7 = vector.broadcast %cst_2 : f32 to vector<32x128xf32>
    %8 = arith.addf %6, %7 : vector<32x128xf32>
    %cst_3 = arith.constant 5.000000e-01 : f32
    %9 = vector.broadcast %cst_3 : f32 to vector<32x128xf32>
    %10 = arith.mulf %9, %8 : vector<32x128xf32>
    %cst_4 = arith.constant 1.000000e-07 : f32
    %11 = vector.broadcast %cst_4 : f32 to vector<32x128xf32>
    %12 = arith.maximumf %10, %11 : vector<32x128xf32>
    %c0_5 = arith.constant 0 : index
    %c0_6 = arith.constant 0 : index
    %13 = vector.load %arg3[%c0_5, %c0_6] : memref<32x128xf32, #tpu.memory_space<vmem>>, vector<32x128xf32>
    %cst_7 = arith.constant 9.99999974E-5 : f32
    %cst_8 = arith.constant 1.000000e+00 : f32
    %14 = vector.broadcast %cst_7 : f32 to vector<32x128xf32>
    %15 = arith.maximumf %14, %13 : vector<32x128xf32>
    %16 = vector.broadcast %cst_8 : f32 to vector<32x128xf32>
    %17 = arith.minimumf %16, %15 : vector<32x128xf32>
    %18 = math.log %17 : vector<32x128xf32>
    %19 = arith.mulf %12, %18 : vector<32x128xf32>
    %c0_9 = arith.constant 0 : index
    %c0_10 = arith.constant 0 : index
    %20 = vector.load %arg5[%c0_9, %c0_10] : memref<8x128xf32, #tpu.memory_space<vmem>>, vector<8x128xf32>
    %21 = vector.shape_cast %19 : vector<32x128xf32> to vector<4x8x128xf32>
    %cst_11 = arith.constant dense<0.000000e+00> : vector<8x128xf32>
    %22 = vector.multi_reduction <add>, %21, %cst_11 [0] : vector<4x8x128xf32> to vector<8x128xf32>
    %23 = arith.addf %20, %22 : vector<8x128xf32>
    %c0_12 = arith.constant 0 : index
    %c0_13 = arith.constant 0 : index
    %24 = vector.load %arg5[%c0_12, %c0_13] : memref<8x128xf32, #tpu.memory_space<vmem>>, vector<8x128xf32>
    tpu.vector_store %arg5[%c0_12, %c0_13], %23 {strides = array<i32>} : memref<8x128xf32, #tpu.memory_space<vmem>>, vector<8x128xf32>,
    %c0_i32_14 = arith.constant 0 : i32
    %25 = arith.cmpi eq, %arg1, %c0_i32_14 : i32
    %26 = arith.extui %25 : i1 to i32
    %c0_i32_15 = arith.constant 0 : i32
    %27 = arith.cmpi ne, %26, %c0_i32_15 : i32
    scf.if %27 {
      %c0_16 = arith.constant 0 : index
      %c0_17 = arith.constant 0 : index
      %28 = vector.load %arg5[%c0_16, %c0_17] : memref<8x128xf32, #tpu.memory_space<vmem>>, vector<8x128xf32>
      %c0_18 = arith.constant 0 : index
      %c0_19 = arith.constant 0 : index
      %29 = vector.load %arg4[%c0_18, %c0_19] : memref<8x128xf32, #tpu.memory_space<vmem>>, vector<8x128xf32>
      tpu.vector_store %arg4[%c0_18, %c0_19], %28 {strides = array<i32>} : memref<8x128xf32, #tpu.memory_space<vmem>>, vector<8x128xf32>,
    } else {
    }
    return
  }
  func.func @transform_0(%arg0: i32, %arg1: i32) -> (i32, i32) {
    %c1_i32 = arith.constant 1 : i32
    %0 = arith.muli %arg0, %c1_i32 : i32
    %1 = arith.addi %0, %arg1 : i32
    %c0_i32 = arith.constant 0 : i32
    %c0_i32_0 = arith.constant 0 : i32
    return %1, %c0_i32 : i32, i32
  }
  func.func @transform_1(%arg0: i32, %arg1: i32) -> (i32, i32) {
    %c1_i32 = arith.constant 1 : i32
    %0 = arith.muli %arg0, %c1_i32 : i32
    %1 = arith.addi %0, %arg1 : i32
    %c0_i32 = arith.constant 0 : i32
    %c0_i32_0 = arith.constant 0 : i32
    return %1, %c0_i32 : i32, i32
  }
  func.func @transform_2(%arg0: i32, %arg1: i32) -> (i32, i32) {
    %c0_i32 = arith.constant 0 : i32
    %c0_i32_0 = arith.constant 0 : i32
    return %arg0, %c0_i32 : i32, i32
  }
}

</mosaic_0001>

<llo_original>
// kernel: tpu_custom_call.1
$region0: #{tpu_custom_call.1}
  #allocation0 [shape = 'u32[]', space=smem, size = 0x4, offset = 0x4, fixed_abs, tag = 'smem constant byte address 0x4 - core index']
  #allocation1 [shape = 'u32[144,128]{1,0:T(1,128)}', space=vmem, size = 0x12000, scoped, tag = 'internal scratch']
  #allocation2 [shape = 'f32[8,128]{1,0:T(8,128)}', space=vmem, size = 0x1000, scoped, tag = 'scratch operand']
  %s0 = inlined_call_operand.hbm [shape: f32[32,128], index: 0, kind: input, shape index: {}]
  %s1 = inlined_call_operand.hbm [shape: f32[32,128], index: 1, kind: input, shape index: {}]
  %s2 = inlined_call_operand.hbm [shape: f32[8,128], index: 2, kind: output, shape index: {}]
  %s3 = sld [smem:[#allocation0]]
  $region34: #{tpu_custom_call.1} parent=0
    _
  %s5 = ssub.s32 1, %s3
  %s6 = scalar_select 0, %s5, %s3
  $region1: #{tpu_custom_call.1} parent=0
    #allocation3 [shape = 'u8[16384]{0}', space=vmem, size = 0x4000, scoped, tag = 'input window, operand 0, single buffered']
    #allocation4 [shape = 's32[1]{0}', space=sflag, size = 0x4, scoped, tag = 'scoped memory for tpu_custom_call.1']
    #allocation5 [shape = 's32[1]{0}', space=sflag, size = 0x4, scoped, tag = 'scoped memory for tpu_custom_call.1']
    #allocation6 [shape = 'u8[16384]{0}', space=vmem, size = 0x4000, scoped, tag = 'input window, operand 1, single buffered']
    #allocation7 [shape = 's32[1]{0}', space=sflag, size = 0x4, scoped, tag = 'scoped memory for tpu_custom_call.1']
    #allocation8 [shape = 'u8[4096]{0}', space=vmem, size = 0x1000, scoped, tag = 'output window, operand 0, single buffered']
    %7 = vsyncpa [#allocation4], 0
    %8 = vsyncpa [#allocation7], 0
    %9 = vsyncpa [#allocation5], 0
    // Predicated region
    $region2: #{tpu_custom_call.1} parent=1 // pred_check
      _
    $region3: #{tpu_custom_call.1} parent=1 // pred_check_branch
      %11 = sbr.rel (0) target = $region5
    $region4: #{tpu_custom_call.1} parent=1 // pred_region
      %s12 = sadd.s32 0, 0
      %s13 = smul.u32 4, %s12
      %s15 = ssub.s32 512, 512
      %16 = vsyncadd [#allocation4], %s15
      %s17 = smul.addr %s13, 128
      %s18 = scalar_lea.hbm %s0, %s17
      %s19 = sshll.u32 [#allocation3], 4
      %s20 = int_to_ptr.vmem [resolvable:$true] %s19
      %25 = dma.hbm_to_vmem [thread:$0]  %s18, 512, %s20, [#allocation4], 128, 128, 8
    $region5: #{tpu_custom_call.1} parent=1 // pred_fallthru
      _
    // Predicated region
    $region6: #{tpu_custom_call.1} parent=1 // pred_check
      _
    $region7: #{tpu_custom_call.1} parent=1 // pred_check_branch
      %27 = sbr.rel (0) target = $region9
    $region8: #{tpu_custom_call.1} parent=1 // pred_region
      %s28 = sadd.s32 0, 0
      %s29 = smul.u32 4, %s28
      %s31 = ssub.s32 512, 512
      %32 = vsyncadd [#allocation7], %s31
      %s33 = smul.addr %s29, 128
      %s34 = scalar_lea.hbm %s1, %s33
      %s35 = sshll.u32 [#allocation6], 4
      %s36 = int_to_ptr.vmem [resolvable:$true] %s35
      %41 = dma.hbm_to_vmem [thread:$0]  %s34, 512, %s36, [#allocation7], 128, 128, 8
    $region9: #{tpu_custom_call.1} parent=1 // pred_fallthru
      _
    // Predicated region
    $region10: #{tpu_custom_call.1} parent=1 // pred_check
      _
    $region11: #{tpu_custom_call.1} parent=1 // pred_check_branch
      %43 = sbr.rel (0) target = $region13
    $region12: #{tpu_custom_call.1} parent=1 // pred_region
      %44 = dma.done [#allocation4], 512
    $region13: #{tpu_custom_call.1} parent=1 // pred_fallthru
      _
    // Predicated region
    $region14: #{tpu_custom_call.1} parent=1 // pred_check
      _
    $region15: #{tpu_custom_call.1} parent=1 // pred_check_branch
      %46 = sbr.rel (0) target = $region17
    $region16: #{tpu_custom_call.1} parent=1 // pred_region
      %47 = dma.done [#allocation7], 512
    $region17: #{tpu_custom_call.1} parent=1 // pred_fallthru
      _
    %s48 = sadd.s32 0, 0
    %s49 = smul.u32 4, %s48
    %s50 = sadd.s32 0, 0
    %s51 = smul.u32 4, %s50
    %p52 = scmp.eq.s32.totalorder 0, 0
    // Predicated region
    $region18: #{tpu_custom_call.1} parent=1 // pred_check
      %p53 = pneg %p52
    $region19: #{tpu_custom_call.1} parent=1 // pred_check_branch
      %55 = sbr.rel (%p53) target = $region21
    $region20: #{tpu_custom_call.1} parent=1 // pred_region
      %56 = vst [vmem:[#allocation2] sm:$0xff] 0.0
    $region21: #{tpu_custom_call.1} parent=1 // pred_fallthru
      _
    %v57 = vld [vmem:[#allocation3] sm:$0xff]
    %v58 = vld [vmem:[#allocation3 + $0x8] sm:$0xff]
    %v59 = vld [vmem:[#allocation3 + $0x10] sm:$0xff]
    %v60 = vld [vmem:[#allocation3 + $0x18] sm:$0xff]
    %v61 = vmul.f32 %v57, 0.5
    %v62 = vmul.f32 %v58, 0.5
    %v63 = vmul.f32 %v59, 0.5
    %v64 = vmul.f32 %v60, 0.5
    %v65 = vtanh.pop %v61
    %v66 = vtanh.pop %v62
    %v67 = vtanh.pop %v63
    %v68 = vtanh.pop %v64
    %v69 = vadd.f32 %v65, 1.0
    %v70 = vadd.f32 %v66, 1.0
    %v71 = vadd.f32 %v67, 1.0
    %v72 = vadd.f32 %v68, 1.0
    %v73 = vmul.f32 %v69, 0.5
    %v74 = vmul.f32 %v70, 0.5
    %v75 = vmul.f32 %v71, 0.5
    %v76 = vmul.f32 %v72, 0.5
    %v77 = vmax.f32 %v73, 1e-07
    %v78 = vmax.f32 %v74, 1e-07
    %v79 = vmax.f32 %v75, 1e-07
    %v80 = vmax.f32 %v76, 1e-07
    %v81 = vld [vmem:[#allocation6] sm:$0xff]
    %v82 = vld [vmem:[#allocation6 + $0x8] sm:$0xff]
    %v83 = vld [vmem:[#allocation6 + $0x10] sm:$0xff]
    %v84 = vld [vmem:[#allocation6 + $0x18] sm:$0xff]
    %v85 = vmax.f32 %v81, 0.0001
    %v86 = vmax.f32 %v82, 0.0001
    %v87 = vmax.f32 %v83, 0.0001
    %v88 = vmax.f32 %v84, 0.0001
    %v89 = vmin.f32 %v85, 1.0
    %v90 = vmin.f32 %v86, 1.0
    %v91 = vmin.f32 %v87, 1.0
    %v92 = vmin.f32 %v88, 1.0
    %v93 = vlog2.pop %v89
    %v94 = vmul.f32 %v93, 0.6931472
    %v95 = vlog2.pop %v90
    %v96 = vmul.f32 %v95, 0.6931472
    %v97 = vlog2.pop %v91
    %v98 = vmul.f32 %v97, 0.6931472
    %v99 = vlog2.pop %v92
    %v100 = vmul.f32 %v99, 0.6931472
    %v101 = vmul.f32 %v77, %v94
    %v102 = vmul.f32 %v78, %v96
    %v103 = vmul.f32 %v79, %v98
    %v104 = vmul.f32 %v80, %v100
    %v105 = vld [vmem:[#allocation2] sm:$0xff]
    %v106 = vadd.f32 %v101, %v102
    %v107 = vadd.f32 %v106, %v103
    %v108 = vadd.f32 %v107, %v104
    %v109 = vadd.f32 %v105, %v108
    %110 = vst [vmem:[#allocation2] sm:$0xff] %v109
    // Predicated region
    $region22: #{tpu_custom_call.1} parent=1 // pred_check
      %p111 = pneg %p52
    $region23: #{tpu_custom_call.1} parent=1 // pred_check_branch
      %113 = sbr.rel (%p111) target = $region25
    $region24: #{tpu_custom_call.1} parent=1 // pred_region
      %v114 = vld [vmem:[#allocation2] sm:$0xff]
      %115 = vst [vmem:[#allocation8] sm:$0xff] %v114
    $region25: #{tpu_custom_call.1} parent=1 // pred_fallthru
      _
    // Predicated region
    $region26: #{tpu_custom_call.1} parent=1 // pred_check
      _
    $region27: #{tpu_custom_call.1} parent=1 // pred_check_branch
      %117 = sbr.rel (0) target = $region29
    $region28: #{tpu_custom_call.1} parent=1 // pred_region
      %s119 = ssub.s32 128, 128
      %120 = vsyncadd [#allocation5], %s119
      %s122 = sshll.u32 [#allocation8], 4
      %s123 = int_to_ptr.vmem [resolvable:$true] %s122
      %125 = dma.vmem_to_hbm [thread:$0]  %s123, 128, %s2, [#allocation5]
    $region29: #{tpu_custom_call.1} parent=1 // pred_fallthru
      _
    // Predicated region
    $region30: #{tpu_custom_call.1} parent=1 // pred_check
      _
    $region31: #{tpu_custom_call.1} parent=1 // pred_check_branch
      %127 = sbr.rel (0) target = $region33
    $region32: #{tpu_custom_call.1} parent=1 // pred_region
      %128 = dma.done [#allocation5], 128
    $region33: #{tpu_custom_call.1} parent=1 // pred_fallthru
      _
    %129 = vsyncpa [#allocation4], 1
    %130 = vsyncpa [#allocation7], 1
    %131 = vsyncpa [#allocation5], 1

</llo_original>
